<compile_context>
chip_gen: v5e
topology: v5e:2x2
jax: 0.10.0
libtpu: 0.0.40
codegen_flags: <defaults>
</compile_context>

<pallas_src>
import jax
import jax.numpy as jnp
from jax.experimental import pallas as pl
from jax.experimental.pallas import tpu as pltpu


_VMEM_TILE_BUDGET = 28 * 1024 * 1024   # target for double-buffered tile footprint
_VMEM_LIMIT = 48 * 1024 * 1024         # scoped VMEM limit; safe on v5e/v6e/v7x


def _round_up(x, m):
    return ((x + m - 1) // m) * m


# ----------------------------- kernels --------------------------------------

def _dense_bias_fullk_kernel(x_ref, w_ref, b_ref, o_ref):
    # x: (tm, K)  w: (K, tn)  b: (1, tn)  o: (tm, tn) -- one MXU pass, one store.
    acc = jnp.dot(x_ref[...], w_ref[...], preferred_element_type=jnp.float32)
    o_ref[...] = (acc + b_ref[...].astype(jnp.float32)).astype(o_ref.dtype)
    # TODO(synk): fuse training-mode dropout mask here (pltpu.prng_seed + prng_random_bits).


def _dense_bias_ksplit_kernel(x_ref, w_ref, b_ref, o_ref, acc_ref):
    # Fallback for hidden sizes too large to keep full K resident.
    k = pl.program_id(2)

    @pl.when(k == 0)
    def _():
        acc_ref[...] = jnp.zeros_like(acc_ref)

    acc_ref[...] += jnp.dot(x_ref[...], w_ref[...], preferred_element_type=jnp.float32)

    @pl.when(k == pl.num_programs(2) - 1)
    def _():
        o_ref[...] = (acc_ref[...] + b_ref[...].astype(jnp.float32)).astype(o_ref.dtype)


# --------------------------- tile planning ----------------------------------

def _plan_tiles(M, k_pad, n_pad, x_bytes, w_bytes, o_bytes):
    m_align = 16  # bf16 sublane-packing safe
    tm_cap = min(512, _round_up(max(M, 1), m_align))
    tm_cands = sorted(
        {t for t in (512, 256, 128, 64, 32, 16, _round_up(max(M, 1), m_align))
         if m_align <= t <= tm_cap},
        reverse=True)
    tn_cands = sorted(
        {t for t in (1024, 768, 512, 256, 128, n_pad)
         if 0 < t <= 1024 and n_pad % t == 0},
        reverse=True)

    def footprint(tm, tn, tk, with_acc):
        b = 2 * (tm * tk * x_bytes + tk * tn * w_bytes + tn * w_bytes)  # dbl-buffered in
        b += 2 * tm * tn * o_bytes                                      # dbl-buffered out
        if with_acc:
            b += tm * tn * 4
        return b

    # Preferred: full-K tiles -> no K grid axis, no accumulator scratch.
    for tn in tn_cands:
        for tm in tm_cands:
            if footprint(tm, tn, k_pad, False) <= _VMEM_TILE_BUDGET:
                return dict(tm=tm, tn=tn, tk=k_pad, split_k=False)

    # Fallback (very large hidden size): split K with an f32 accumulator.
    for tk in (1024, 512, 256, 128):
        if k_pad % tk:
            continue
        for tn in tn_cands:
            for tm in tm_cands:
                if footprint(tm, tn, tk, True) <= _VMEM_TILE_BUDGET:
                    return dict(tm=tm, tn=tn, tk=tk, split_k=True)

    # Last resort: minimal tiles (always fits).
    return dict(tm=m_align, tn=min(tn_cands) if tn_cands else n_pad, tk=128, split_k=True)


# --------------------------- parameter prep ---------------------------------

def prepare_albert_self_output_params(weight, bias, *, param_dtype=None):
    """One-time parameter prep, hoisted out of the per-forward path.

    weight: (H_out, H_in) as stored by nn.Linear; bias: (H_out,).
    Transposes to (H_in, H_out), optionally casts (e.g. jnp.bfloat16 to halve the
    weight-stream HBM traffic; accumulation stays f32), and zero-pads to MXU-friendly
    multiples (256 when H >= 256, else 128). Returns (weight_t_padded, bias_padded_2d).
    """
    H_out, H_in = weight.shape
    k_pad = _round_up(H_in, 256 if H_in >= 256 else 128)
    n_pad = _round_up(H_out, 256 if H_out >= 256 else 128)

    w_t = jnp.asarray(weight).T
    if param_dtype is not None:
        w_t = w_t.astype(param_dtype)
    b = jnp.asarray(bias)
    if (k_pad, n_pad) != (H_in, H_out):
        w_t = jnp.pad(w_t, ((0, k_pad - H_in), (0, n_pad - H_out)))
        b = jnp.pad(b, (0, n_pad - H_out))
    return w_t, b.reshape(1, n_pad)


# ------------------------------ forward -------------------------------------

def albert_self_output(hidden_states, input_tensor, weight_t_p, bias_p):
    """AlbertSelfOutput.forward: dropout(dense(hidden_states)).

    Matches the reference module: `input_tensor` is accepted but unused, and dropout is
    inference-mode identity.
    """
    del input_tensor  # unused by the reference forward
    B, S, H = hidden_states.shape
    M = B * S
    out_dtype = hidden_states.dtype
    k_pad, n_pad = weight_t_p.shape

    x2d = hidden_states.reshape(M, H)
    if x2d.dtype != weight_t_p.dtype:
        x2d = x2d.astype(weight_t_p.dtype)  # e.g. bf16 weights -> bf16 MXU inputs

    x_bytes = jnp.dtype(x2d.dtype).itemsize
    w_bytes = jnp.dtype(weight_t_p.dtype).itemsize
    o_bytes = jnp.dtype(out_dtype).itemsize

    plan = _plan_tiles(M, k_pad, n_pad, x_bytes, w_bytes, o_bytes)
    tm, tn, tk = plan["tm"], plan["tn"], plan["tk"]

    m_pad = _round_up(M, tm)
    if (m_pad, k_pad) != (M, H):
        x_p = jnp.pad(x2d, ((0, m_pad - M), (0, k_pad - H)))  # zero K-pad is exact
    else:
        x_p = x2d

    m_tiles = m_pad // tm
    n_tiles = n_pad // tn

    if not plan["split_k"]:
        x_total = m_pad * k_pad * x_bytes
        w_total = k_pad * n_pad * w_bytes
        # Grid-order choice: keep whichever operand would otherwise be re-streamed more
        # VMEM-resident across the (fast) inner grid axis.
        act_major_traffic = x_total + m_tiles * w_total
        wgt_major_traffic = w_total + n_tiles * x_total
        if wgt_major_traffic < act_major_traffic:
            grid = (n_tiles, m_tiles)
            x_spec = pl.BlockSpec((tm, tk), lambda j, i: (i, 0))
            w_spec = pl.BlockSpec((tk, tn), lambda j, i: (0, j))
            b_spec = pl.BlockSpec((1, tn), lambda j, i: (0, j))
            o_spec = pl.BlockSpec((tm, tn), lambda j, i: (i, j))
            bytes_accessed = wgt_major_traffic + m_pad * n_pad * o_bytes
        else:
            grid = (m_tiles, n_tiles)
            x_spec = pl.BlockSpec((tm, tk), lambda i, j: (i, 0))
            w_spec = pl.BlockSpec((tk, tn), lambda i, j: (0, j))
            b_spec = pl.BlockSpec((1, tn), lambda i, j: (0, j))
            o_spec = pl.BlockSpec((tm, tn), lambda i, j: (i, j))
            bytes_accessed = act_major_traffic + m_pad * n_pad * o_bytes
        kernel = _dense_bias_fullk_kernel
        scratch = []
        dim_sem = ("parallel", "parallel")
    else:
        k_tiles = k_pad // tk
        grid = (m_tiles, n_tiles, k_tiles)
        x_spec = pl.BlockSpec((tm, tk), lambda i, j, k: (i, k))
        w_spec = pl.BlockSpec((tk, tn), lambda i, j, k: (k, j))
        b_spec = pl.BlockSpec((1, tn), lambda i, j, k: (0, j))
        o_spec = pl.BlockSpec((tm, tn), lambda i, j, k: (i, j))
        kernel = _dense_bias_ksplit_kernel
        scratch = [pltpu.VMEM((tm, tn), jnp.float32)]
        dim_sem = ("parallel", "parallel", "arbitrary")
        bytes_accessed = (n_tiles * m_pad * k_pad * x_bytes
                          + m_tiles * k_pad * n_pad * w_bytes
                          + m_pad * n_pad * o_bytes)

    cost = pl.CostEstimate(
        flops=2 * m_pad * n_pad * k_pad,
        transcendentals=0,
        bytes_accessed=int(bytes_accessed),
    )

    out_p = pl.pallas_call(
        kernel,
        out_shape=jax.ShapeDtypeStruct((m_pad, n_pad), out_dtype),
        grid_spec=pltpu.PrefetchScalarGridSpec(
            num_scalar_prefetch=0,
            grid=grid,
            in_specs=[x_spec, w_spec, b_spec],
            out_specs=o_spec,
            scratch_shapes=scratch,
        ),
        compiler_params=pltpu.CompilerParams(
            dimension_semantics=dim_sem,
            vmem_limit_bytes=_VMEM_LIMIT,
        ),
        cost_estimate=cost,
    )(x_p, weight_t_p, bias_p)

    out2d = out_p[:M, :H] if (m_pad, n_pad) != (M, H) else out_p
    return out2d.reshape(B, S, H)


if __name__ == "__main__":
    B, S, H = 2, 8, 32  # batch, seq, hidden_size

    key = jax.random.PRNGKey(0)
    k_x, k_r, k_w, k_b = jax.random.split(key, 4)

    hidden_states = jax.random.normal(k_x, (B, S, H), dtype=jnp.float32)
    input_tensor = jax.random.normal(k_r, (B, S, H), dtype=jnp.float32)

    # nn.Linear(H, H): weight (H_out, H_in), bias (H_out,)
    bound = 1.0 / (H ** 0.5)
    weight = jax.random.uniform(k_w, (H, H), minval=-bound, maxval=bound,
                                dtype=jnp.float32)
    bias = jax.random.uniform(k_b, (H,), minval=-bound, maxval=bound,
                              dtype=jnp.float32)

    # One-time parameter prep (transpose + pad), hoisted out of the per-call path.
    weight_t_p, bias_p = prepare_albert_self_output_params(weight, bias)

    out = albert_self_output(hidden_states, input_tensor, weight_t_p, bias_p)
    jax.block_until_ready(out)

    # Reference in plain JAX (dropout = identity at inference; input_tensor unused).
    ref = (hidden_states.reshape(-1, H) @ weight.T + bias).reshape(B, S, H)
    assert out.shape == ref.shape
    assert jnp.allclose(out, ref, atol=1e-5, rtol=1e-5), "mismatch vs reference"

    print("KERNEL_OK")
</pallas_src>

<mosaic_0001>
module attributes {stable_mosaic.version = 11 : i64} {
  func.func @_dense_bias_fullk_kernel(%arg0: i32, %arg1: i32, %arg2: memref<16x128xf32, #tpu.memory_space<vmem>>, %arg3: memref<128x128xf32, #tpu.memory_space<vmem>>, %arg4: memref<1x128xf32, #tpu.memory_space<vmem>>, %arg5: memref<16x128xf32, #tpu.memory_space<vmem>>) attributes {dimension_semantics = [#tpu.dimension_semantics<parallel>, #tpu.dimension_semantics<parallel>], iteration_bounds = array<i64: 1, 1>, scalar_prefetch = 0 : i64, scratch_operands = 0 : i64, tpu.core_type = #tpu.core_type<tc>, window_params = [{transform_indices = @transform_0, window_bounds = array<i64: 16, 128>}, {transform_indices = @transform_1, window_bounds = array<i64: 128, 128>}, {transform_indices = @transform_2, window_bounds = array<i64: 1, 128>}, {transform_indices = @transform_3, window_bounds = array<i64: 16, 128>}]} {
    %c0 = arith.constant 0 : index
    %c0_0 = arith.constant 0 : index
    %0 = vector.load %arg2[%c0, %c0_0] : memref<16x128xf32, #tpu.memory_space<vmem>>, vector<16x128xf32>
    %c0_1 = arith.constant 0 : index
    %c0_2 = arith.constant 0 : index
    %1 = vector.load %arg3[%c0_1, %c0_2] : memref<128x128xf32, #tpu.memory_space<vmem>>, vector<128x128xf32>
    %cst = arith.constant dense<0.000000e+00> : vector<16x128xf32>
    %2 = tpu.matmul %0, %1, %cst {dimension_numbers = #tpu.dot_dimension_numbers<[1], [0], [0], [1], [0, 0, 1, 1], [], []>} : vector<16x128xf32>, vector<128x128xf32>, vector<16x128xf32> -> vector<16x128xf32>
    %c0_3 = arith.constant 0 : index
    %c0_4 = arith.constant 0 : index
    %3 = vector.load %arg4[%c0_3, %c0_4] : memref<1x128xf32, #tpu.memory_space<vmem>>, vector<1x128xf32>
    %4 = vector.broadcast %3 : vector<1x128xf32> to vector<16x128xf32>
    %5 = arith.addf %2, %4 : vector<16x128xf32>
    %c0_5 = arith.constant 0 : index
    %c0_6 = arith.constant 0 : index
    %6 = vector.load %arg5[%c0_5, %c0_6] : memref<16x128xf32, #tpu.memory_space<vmem>>, vector<16x128xf32>
    tpu.vector_store %arg5[%c0_5, %c0_6], %5 {strides = array<i32>} : memref<16x128xf32, #tpu.memory_space<vmem>>, vector<16x128xf32>,
    return
  }
  func.func @transform_0(%arg0: i32, %arg1: i32) -> (i32, i32) {
    %c0_i32 = arith.constant 0 : i32
    %c0_i32_0 = arith.constant 0 : i32
    return %arg0, %c0_i32 : i32, i32
  }
  func.func @transform_1(%arg0: i32, %arg1: i32) -> (i32, i32) {
    %c0_i32 = arith.constant 0 : i32
    %c0_i32_0 = arith.constant 0 : i32
    return %c0_i32, %arg1 : i32, i32
  }
  func.func @transform_2(%arg0: i32, %arg1: i32) -> (i32, i32) {
    %c0_i32 = arith.constant 0 : i32
    %c0_i32_0 = arith.constant 0 : i32
    return %c0_i32, %arg1 : i32, i32
  }
  func.func @transform_3(%arg0: i32, %arg1: i32) -> (i32, i32) {
    %c0_i32 = arith.constant 0 : i32
    return %arg0, %arg1 : i32, i32
  }
}

</mosaic_0001>

<llo_original>
// kernel: tpu_custom_call.1
$region0: #{tpu_custom_call.1}
  #allocation0 [shape = 'u32[]', space=smem, size = 0x4, offset = 0x4, fixed_abs, tag = 'smem constant byte address 0x4 - core index']
  #allocation1 [shape = 'u32[72,128]{1,0:T(1,128)}', space=vmem, size = 0x9000, scoped, tag = 'internal scratch']
  %s0 = inlined_call_operand.hbm [shape: f32[16,128], index: 0, kind: input, shape index: {}]
  %s1 = inlined_call_operand.hbm [shape: f32[128,128], index: 1, kind: input, shape index: {}]
  %s2 = inlined_call_operand.vmem [shape: f32[1,128], index: 2, kind: input, shape index: {}]
  %s3 = inlined_call_operand.hbm [shape: f32[16,128], index: 3, kind: output, shape index: {}]
  %s4 = sld [smem:[#allocation0]]
  $region30: #{tpu_custom_call.1} parent=0
    _
  %s6 = ssub.s32 1, %s4
  %s7 = scalar_select 0, %s6, %s4
  $region1: #{tpu_custom_call.1} parent=0
    #allocation2 [shape = 'u8[8192]{0}', space=vmem, size = 0x2000, scoped, tag = 'input window, operand 0, single buffered']
    #allocation3 [shape = 's32[1]{0}', space=sflag, size = 0x4, scoped, tag = 'scoped memory for tpu_custom_call.1']
    #allocation4 [shape = 's32[1]{0}', space=sflag, size = 0x4, scoped, tag = 'scoped memory for tpu_custom_call.1']
    #allocation5 [shape = 'u8[65536]{0}', space=vmem, size = 0x10000, scoped, tag = 'input window, operand 1, single buffered']
    #allocation6 [shape = 's32[1]{0}', space=sflag, size = 0x4, scoped, tag = 'scoped memory for tpu_custom_call.1']
    #allocation7 [shape = 'u8[8192]{0}', space=vmem, size = 0x2000, scoped, tag = 'output window, operand 0, single buffered']
    %8 = vsyncpa [#allocation3], 0
    %9 = vsyncpa [#allocation6], 0
    %10 = vsyncpa [#allocation4], 0
    // Predicated region
    $region2: #{tpu_custom_call.1} parent=1 // pred_check
      _
    $region3: #{tpu_custom_call.1} parent=1 // pred_check_branch
      %12 = sbr.rel (0) target = $region5
    $region4: #{tpu_custom_call.1} parent=1 // pred_region
      %14 = vsyncadd [#allocation3], 0
      %s15 = sshll.u32 %s0, 4
      %s16 = int_to_ptr.hbm [resolvable:$true] %s15
      %s17 = sshll.u32 [#allocation2], 4
      %s18 = int_to_ptr.vmem [resolvable:$true] %s17
      %23 = dma.hbm_to_vmem [thread:$0]  %s16, 256, %s18, [#allocation3], 128, 128, 8
    $region5: #{tpu_custom_call.1} parent=1 // pred_fallthru
      _
    // Predicated region
    $region6: #{tpu_custom_call.1} parent=1 // pred_check
      _
    $region7: #{tpu_custom_call.1} parent=1 // pred_check_branch
      %25 = sbr.rel (0) target = $region9
    $region8: #{tpu_custom_call.1} parent=1 // pred_region
      %27 = vsyncadd [#allocation6], 0
      %s28 = sshll.u32 %s1, 4
      %s29 = int_to_ptr.hbm [resolvable:$true] %s28
      %s30 = sshll.u32 [#allocation5], 4
      %s31 = int_to_ptr.vmem [resolvable:$true] %s30
      %36 = dma.hbm_to_vmem [thread:$0]  %s29, 2048, %s31, [#allocation6], 128, 128, 8
    $region9: #{tpu_custom_call.1} parent=1 // pred_fallthru
      _
    // Predicated region
    $region10: #{tpu_custom_call.1} parent=1 // pred_check
      _
    $region11: #{tpu_custom_call.1} parent=1 // pred_check_branch
      %38 = sbr.rel (0) target = $region13
    $region12: #{tpu_custom_call.1} parent=1 // pred_region
      _
    $region13: #{tpu_custom_call.1} parent=1 // pred_fallthru
      _
    // Predicated region
    $region14: #{tpu_custom_call.1} parent=1 // pred_check
      _
    $region15: #{tpu_custom_call.1} parent=1 // pred_check_branch
      %40 = sbr.rel (0) target = $region17
    $region16: #{tpu_custom_call.1} parent=1 // pred_region
      %42 = dma.done [#allocation3], 256
    $region17: #{tpu_custom_call.1} parent=1 // pred_fallthru
      _
    // Predicated region
    $region18: #{tpu_custom_call.1} parent=1 // pred_check
      _
    $region19: #{tpu_custom_call.1} parent=1 // pred_check_branch
      %44 = sbr.rel (0) target = $region21
    $region20: #{tpu_custom_call.1} parent=1 // pred_region
      %46 = dma.done [#allocation6], 2048
    $region21: #{tpu_custom_call.1} parent=1 // pred_fallthru
      _
    %v47 = vld [vmem:[#allocation2] sm:$0xff]
    %v48 = vld [vmem:[#allocation2 + $0x8] sm:$0xff]
    %v49 = vld [vmem:[#allocation5] sm:$0xff]
    %v50 = vld [vmem:[#allocation5 + $0x8] sm:$0xff]
    %v51 = vld [vmem:[#allocation5 + $0x10] sm:$0xff]
    %v52 = vld [vmem:[#allocation5 + $0x18] sm:$0xff]
    %v53 = vld [vmem:[#allocation5 + $0x20] sm:$0xff]
    %v54 = vld [vmem:[#allocation5 + $0x28] sm:$0xff]
    %v55 = vld [vmem:[#allocation5 + $0x30] sm:$0xff]
    %v56 = vld [vmem:[#allocation5 + $0x38] sm:$0xff]
    %v57 = vld [vmem:[#allocation5 + $0x40] sm:$0xff]
    %v58 = vld [vmem:[#allocation5 + $0x48] sm:$0xff]
    %v59 = vld [vmem:[#allocation5 + $0x50] sm:$0xff]
    %v60 = vld [vmem:[#allocation5 + $0x58] sm:$0xff]
    %v61 = vld [vmem:[#allocation5 + $0x60] sm:$0xff]
    %v62 = vld [vmem:[#allocation5 + $0x68] sm:$0xff]
    %v63 = vld [vmem:[#allocation5 + $0x70] sm:$0xff]
    %v64 = vld [vmem:[#allocation5 + $0x78] sm:$0xff]
    %v65 = vld [vmem:[%s2] sm:$0x1]
    %v67 = vperm.slane %v65, 0
    %69 = vmatpush.msra.mxu0 %v64
    %70 = vmatpush.msra.mxu0 %v63
    %71 = vmatpush.msra.mxu0 %v62
    %72 = vmatpush.msra.mxu0 %v61
    %73 = vmatpush.msra.mxu0 %v60
    %74 = vmatpush.msra.mxu0 %v59
    %75 = vmatpush.msra.mxu0 %v58
    %76 = vmatpush.msra.mxu0 %v57
    %77 = vmatpush.msra.mxu0 %v56
    %78 = vmatpush.msra.mxu0 %v55
    %79 = vmatpush.msra.mxu0 %v54
    %80 = vmatpush.msra.mxu0 %v53
    %81 = vmatpush.msra.mxu0 %v52
    %82 = vmatpush.msra.mxu0 %v51
    %83 = vmatpush.msra.mxu0 %v50
    %84 = vmatpush.msra.mxu0 %v49
    %85 = vmatmul.f32.gmra.mxu0 %v47
    %v86 = vpop.f32.mrf.mxu0
    %v87 = vadd.f32 %v67, %v86
    %88 = vmatmul.f32.gmra.mxu0 %v48
    %v89 = vpop.f32.mrf.mxu0
    %v90 = vadd.f32 %v67, %v89
    %91 = vdwg.mxu0
    %92 = vst [vmem:[#allocation7] sm:$0xff] %v87
    %93 = vst [vmem:[#allocation7 + $0x8] sm:$0xff] %v90
    // Predicated region
    $region22: #{tpu_custom_call.1} parent=1 // pred_check
      _
    $region23: #{tpu_custom_call.1} parent=1 // pred_check_branch
      %95 = sbr.rel (0) target = $region25
    $region24: #{tpu_custom_call.1} parent=1 // pred_region
      %97 = vsyncadd [#allocation4], 0
      %s98 = sshll.u32 [#allocation7], 4
      %s99 = int_to_ptr.vmem [resolvable:$true] %s98
      %s100 = sshll.u32 %s3, 4
      %s101 = int_to_ptr.hbm [resolvable:$true] %s100
      %106 = dma.vmem_to_hbm [thread:$0]  %s99, 256, %s101, [#allocation4], 128, 128, 8
    $region25: #{tpu_custom_call.1} parent=1 // pred_fallthru
      _
    // Predicated region
    $region26: #{tpu_custom_call.1} parent=1 // pred_check
      _
    $region27: #{tpu_custom_call.1} parent=1 // pred_check_branch
      %108 = sbr.rel (0) target = $region29
    $region28: #{tpu_custom_call.1} parent=1 // pred_region
      %110 = dma.done [#allocation4], 256
    $region29: #{tpu_custom_call.1} parent=1 // pred_fallthru
      _
    %111 = vsyncpa [#allocation3], 1
    %112 = vsyncpa [#allocation6], 1
    %113 = vsyncpa [#allocation4], 1

</llo_original>
